<compile_context>
chip_gen: v7x
topology: tpu7x:2x2x1
jax: 0.10.0
libtpu: 0.0.40
codegen_flags: <defaults>
</compile_context>

<pallas_src>
import functools
import numpy as np
import jax
import jax.numpy as jnp
from jax import lax
from jax.experimental import pallas as pl
from jax.experimental.pallas import tpu as pltpu

N_MEL = 16       # mel channels
D_TEXT = 16      # text embedding dim
HIDDEN = 64      # denoiser hidden dim (packed cond/uncond -> 128 lanes)
HOP = 32         # waveform samples per mel frame (vocoder upsampling)
D_TIME = 16      # sinusoidal time-feature half-dim
VOCAB = 32       # text vocab size
MAX_ROW_TILE = 2048


def _round_up(x, m):
    return ((x + m - 1) // m) * m


def _choose_row_tile(rows):
    """Pick a row tile that (a) gives >=2 parallel blocks whenever possible so
    both v7x TensorCores get work, and (b) uses fat (<=2048-row) tiles on big
    problems to amortize per-grid-step overhead (VMEM per tile stays ~3 MB)."""
    r8 = _round_up(max(rows, 1), 8)
    half = _round_up((r8 + 1) // 2, 8)
    return max(8, min(half, MAX_ROW_TILE))


# ----------------------------------------------------------------------------
# Fused Pallas kernel: all ODE steps + CFG + vocoder for one row tile
# ----------------------------------------------------------------------------
def _fused_ode_vocoder_kernel(y0_ref, ct_ref, temb_ref, w1x_ref, w2cfg_ref,
                              b2dt_ref, wv_ref, bv_ref, wav_ref):
    steps = temb_ref.shape[0]

    def step(k, y):
        # first layer, cond/uncond packed into 128 lanes:
        #   lanes 0:64  -> pre_c = x@w1x + temb[k] + ct
        #   lanes 64:128-> pre_u = x@w1x + temb[k]
        pre = (jnp.dot(y.astype(jnp.bfloat16), w1x_ref[...],
                       preferred_element_type=jnp.float32)
               + temb_ref[pl.ds(k, 1), :] + ct_ref[...])
        # TODO(synk): real F5-TTS uses exact-erf GELU; tanh approximation here.
        h = jax.nn.gelu(pre)
        # CFG + dt folded into per-step weights: one K=128 matmul per step.
        upd = (jnp.dot(h.astype(jnp.bfloat16), w2cfg_ref[k],
                       preferred_element_type=jnp.float32)
               + b2dt_ref[pl.ds(k, 1), :])
        return y + upd                                    # Euler update

    y = lax.fori_loop(0, steps, step, y0_ref[...], unroll=True)

    # vocoder fused into the tail: mel state never touches HBM.
    # TODO(synk): HOP=32 output is not lane-dense (masked stores); packing 4
    # frames/row with a block-diagonal w_voc would make it 128-lane dense.
    wav_ref[...] = jnp.tanh(
        jnp.dot(y.astype(jnp.bfloat16), wv_ref[...],
                preferred_element_type=jnp.float32) + bv_ref[...])


def fused_ode_vocode(y0_rows, ct_rows, temb_dup, w1x_dup, w2cfg_dt, b2dt,
                     w_voc, b_voc, row_tile):
    padded_rows = y0_rows.shape[0]
    steps = temb_dup.shape[0]
    row = lambda i: (i, 0)
    full2 = lambda i: (0, 0)
    full3 = lambda i: (0, 0, 0)
    return pl.pallas_call(
        _fused_ode_vocoder_kernel,
        out_shape=jax.ShapeDtypeStruct((padded_rows, HOP), jnp.float32),
        grid_spec=pltpu.PrefetchScalarGridSpec(
            num_scalar_prefetch=0,
            grid=(padded_rows // row_tile,),
            in_specs=[
                pl.BlockSpec((row_tile, N_MEL), row),          # initial noise
                pl.BlockSpec((row_tile, 2 * HIDDEN), row),     # packed cond+text proj
                pl.BlockSpec((steps, 2 * HIDDEN), full2),      # packed time embeddings
                pl.BlockSpec((N_MEL, 2 * HIDDEN), full2),      # w1x duplicated (bf16)
                pl.BlockSpec((steps, 2 * HIDDEN, N_MEL), full3),  # per-step CFG*dt*w2 (bf16)
                pl.BlockSpec((steps, N_MEL), full2),           # per-step dt*b2
                pl.BlockSpec((N_MEL, HOP), full2),             # w_voc (bf16)
                pl.BlockSpec((1, HOP), full2),                 # b_voc
            ],
            out_specs=pl.BlockSpec((row_tile, HOP), row),
        ),
        compiler_params=pltpu.CompilerParams(
            dimension_semantics=("parallel",)),
    )(y0_rows, ct_rows, temb_dup, w1x_dup, w2cfg_dt, b2dt, w_voc, b_voc)


# ----------------------------------------------------------------------------
# jitted forward (everything outside the kernel is one-time preprocessing)
# ----------------------------------------------------------------------------
@functools.partial(jax.jit,
                   static_argnames=("duration", "steps", "ref_audio_len"))
def _forward_impl(params, cond, text, noise_key, cfg_strength, sway_coef,
                  *, duration, steps, ref_audio_len):
    B, t_ref, n_mel = cond.shape

    # pad reference mel with zeros out to the requested duration
    cond_full = jnp.zeros((B, duration, n_mel), jnp.float32)
    cond_full = cond_full.at[:, :t_ref, :].set(cond.astype(jnp.float32))

    # frame-aligned text features (nearest-index expansion to `duration`)
    text_emb = params["text_embed"][text]                     # [B, T_text, D]
    t_text = text.shape[1]
    frame_idx = np.arange(duration) * t_text // duration
    text_frames = text_emb[:, frame_idx, :]                   # [B, dur, D]

    # sway-sampled time schedule: t += s*(cos(pi/2 t) - 1 + t)
    t = jnp.linspace(0.0, 1.0, steps + 1, dtype=jnp.float32)
    t = t + jnp.float32(sway_coef) * (jnp.cos(jnp.pi / 2.0 * t) - 1.0 + t)
    dt = t[1:] - t[:-1]                                       # [steps]

    # all per-step time embeddings at once (first-layer bias folded in),
    # duplicated over the two packed branches (cond | uncond) -> 128 lanes.
    freqs = jnp.exp(jnp.arange(D_TIME, dtype=jnp.float32)
                    * (-np.log(10000.0) / D_TIME))
    ang = t[:steps, None] * freqs[None, :]
    feat = jnp.concatenate([jnp.sin(ang), jnp.cos(ang)], axis=1)
    temb = feat @ params["w_time"] + params["b_time"] + params["b1"]   # [steps,64]
    temb_dup = jnp.concatenate([temb, temb], axis=1)                    # [steps,128]

    # cond/text first-layer projection is step-invariant: hoist out of the
    # loop; zero-pad lanes 64:128 so it only touches the cond branch.
    rows = B * duration
    cond_rows = cond_full.reshape(rows, n_mel)
    text_rows = text_frames.reshape(rows, D_TEXT)
    ct = cond_rows @ params["w1c"] + text_rows @ params["w1t"]          # [rows,64]
    ct_rows = jnp.concatenate([ct, jnp.zeros_like(ct)], axis=1)         # [rows,128]

    # fold CFG and dt into the (linear) second layer:
    #   v_cfg = [(1+cfg)*h_c - cfg*h_u] @ w2 + b2 ;  y += dt * v_cfg
    cfg = jnp.float32(cfg_strength)
    w2cfg = jnp.concatenate([(1.0 + cfg) * params["w2"],
                             (-cfg) * params["w2"]], axis=0)            # [128,16]
    w2cfg_dt = (dt[:, None, None] * w2cfg[None]).astype(jnp.bfloat16)   # [steps,128,16]
    b2dt = dt[:, None] * params["b2"]                                   # [steps,16]

    # first-layer weight duplicated for the packed branches, bf16 for the MXU
    w1x_dup = jnp.concatenate([params["w1x"], params["w1x"]],
                              axis=1).astype(jnp.bfloat16)              # [16,128]
    w_voc = params["w_voc"].astype(jnp.bfloat16)
    b_voc = params["b_voc"]

    # initial noise
    y0_rows = jax.random.normal(noise_key, (rows, n_mel), jnp.float32)

    # pad rows so the (parallel) row axis tiles evenly
    row_tile = _choose_row_tile(rows)
    padded = _round_up(rows, row_tile)
    if padded != rows:
        pad = padded - rows
        y0_rows = jnp.pad(y0_rows, ((0, pad), (0, 0)))
        ct_rows = jnp.pad(ct_rows, ((0, pad), (0, 0)))

    wav = fused_ode_vocode(y0_rows, ct_rows, temb_dup, w1x_dup, w2cfg_dt,
                           b2dt, w_voc, b_voc, row_tile)

    # drop row padding and the reference frames
    t_gen = duration - ref_audio_len
    wav = wav[:rows].reshape(B, duration, HOP)[:, ref_audio_len:, :]
    return wav.reshape(B, t_gen * HOP)


# ----------------------------------------------------------------------------
# ModelWrapper (JAX analogue of the PyTorch wrapper)
# ----------------------------------------------------------------------------
class ModelWrapper:
    """out = model.inference_for_onnx(cond, text, duration, steps,
    cfg_strength, sway_sampling_coef, vocoder=vocoder): flow-matching Euler
    sampling with CFG, then vocoder decode.
    """
    # TODO(synk): the real F5-TTS DiT transformer and Vocos ISTFT head cannot
    # be reproduced without checkpoints; structurally-equivalent synthetic
    # denoiser/vocoder with deterministic weights stands in.

    def __init__(self, seed=0):
        rng = np.random.RandomState(seed)

        def init(*shape, scale=0.02):
            return jnp.asarray(
                rng.normal(0.0, scale, size=shape).astype(np.float32))

        self.params = dict(
            text_embed=init(VOCAB, D_TEXT, scale=0.1),
            w_time=init(2 * D_TIME, HIDDEN),
            b_time=jnp.zeros((1, HIDDEN), jnp.float32),
            w1x=init(N_MEL, HIDDEN),
            w1c=init(N_MEL, HIDDEN),
            w1t=init(D_TEXT, HIDDEN),
            b1=jnp.zeros((1, HIDDEN), jnp.float32),
            w2=init(HIDDEN, N_MEL),
            b2=jnp.zeros((1, N_MEL), jnp.float32),
            w_voc=init(N_MEL, HOP, scale=0.1),
            b_voc=jnp.zeros((1, HOP), jnp.float32),
        )

    def __call__(self, cond, text, duration, steps, cfg_strength,
                 sway_sampling_coef, ref_audio_len, noise_key):
        return _forward_impl(self.params, cond, text, noise_key,
                             jnp.float32(cfg_strength),
                             jnp.float32(sway_sampling_coef),
                             duration=int(duration), steps=int(steps),
                             ref_audio_len=int(ref_audio_len))


if __name__ == "__main__":
    key = jax.random.PRNGKey(0)
    k_cond, k_text, k_noise = jax.random.split(key, 3)

    B, T_REF, T_TEXT = 2, 8, 8
    DURATION, STEPS = 16, 4
    CFG_STRENGTH, SWAY = 2.0, -1.0

    cond = jax.random.normal(k_cond, (B, T_REF, N_MEL), jnp.float32)
    text = jax.random.randint(k_text, (B, T_TEXT), 0, VOCAB, dtype=jnp.int32)

    model = ModelWrapper(seed=0)
    out = model(cond, text, DURATION, STEPS, CFG_STRENGTH, SWAY,
                ref_audio_len=T_REF, noise_key=k_noise)
    out = jax.block_until_ready(out)

    assert out.shape == (B, (DURATION - T_REF) * HOP), out.shape
    assert out.dtype == jnp.float32
    assert bool(jnp.all(jnp.isfinite(out)))
    print("KERNEL_OK")
</pallas_src>

<mosaic_0001>
module attributes {stable_mosaic.version = 11 : i64} {
  func.func @_fused_ode_vocoder_kernel(%arg0: i32, %arg1: memref<16x16xf32, #tpu.memory_space<vmem>>, %arg2: memref<16x128xf32, #tpu.memory_space<vmem>>, %arg3: memref<4x128xf32, #tpu.memory_space<vmem>>, %arg4: memref<16x128xbf16, #tpu.memory_space<vmem>>, %arg5: memref<4x128x16xbf16, #tpu.memory_space<vmem>>, %arg6: memref<4x16xf32, #tpu.memory_space<vmem>>, %arg7: memref<16x32xbf16, #tpu.memory_space<vmem>>, %arg8: memref<1x32xf32, #tpu.memory_space<vmem>>, %arg9: memref<16x32xf32, #tpu.memory_space<vmem>>) attributes {dimension_semantics = [#tpu.dimension_semantics<parallel>], iteration_bounds = array<i64: 2>, scalar_prefetch = 0 : i64, scratch_operands = 0 : i64, tpu.core_type = #tpu.core_type<tc>, window_params = [{transform_indices = @transform_0, window_bounds = array<i64: 16, 16>}, {transform_indices = @transform_1, window_bounds = array<i64: 16, 128>}, {pipeline_mode = #tpu.pipeline_mode<synchronous>, transform_indices = @transform_2, window_bounds = array<i64: 4, 128>}, {pipeline_mode = #tpu.pipeline_mode<synchronous>, transform_indices = @transform_3, window_bounds = array<i64: 16, 128>}, {pipeline_mode = #tpu.pipeline_mode<synchronous>, transform_indices = @transform_4, window_bounds = array<i64: 4, 128, 16>}, {pipeline_mode = #tpu.pipeline_mode<synchronous>, transform_indices = @transform_5, window_bounds = array<i64: 4, 16>}, {pipeline_mode = #tpu.pipeline_mode<synchronous>, transform_indices = @transform_6, window_bounds = array<i64: 16, 32>}, {pipeline_mode = #tpu.pipeline_mode<synchronous>, transform_indices = @transform_7, window_bounds = array<i64: 1, 32>}, {transform_indices = @transform_8, window_bounds = array<i64: 16, 32>}]} {
    %c0 = arith.constant 0 : index
    %c0_0 = arith.constant 0 : index
    %0 = vector.load %arg1[%c0, %c0_0] : memref<16x16xf32, #tpu.memory_space<vmem>>, vector<16x16xf32>
    %c0_i32 = arith.constant 0 : i32
    %1 = arith.truncf %0 : vector<16x16xf32> to vector<16x16xbf16>
    %c0_1 = arith.constant 0 : index
    %c0_2 = arith.constant 0 : index
    %2 = vector.load %arg4[%c0_1, %c0_2] : memref<16x128xbf16, #tpu.memory_space<vmem>>, vector<16x128xbf16>
    %cst = arith.constant dense<0.000000e+00> : vector<16x128xf32>
    %3 = tpu.matmul %1, %2, %cst {dimension_numbers = #tpu.dot_dimension_numbers<[1], [0], [0], [1], [0, 0, 1, 1], [], []>} : vector<16x16xbf16>, vector<16x128xbf16>, vector<16x128xf32> -> vector<16x128xf32>
    %4 = arith.index_cast %c0_i32 : i32 to index
    %c0_3 = arith.constant 0 : index
    %5 = vector.load %arg3[%4, %c0_3] : memref<4x128xf32, #tpu.memory_space<vmem>>, vector<1x128xf32>
    %6 = vector.broadcast %5 : vector<1x128xf32> to vector<16x128xf32>
    %7 = arith.addf %3, %6 : vector<16x128xf32>
    %c0_4 = arith.constant 0 : index
    %c0_5 = arith.constant 0 : index
    %8 = vector.load %arg2[%c0_4, %c0_5] : memref<16x128xf32, #tpu.memory_space<vmem>>, vector<16x128xf32>
    %9 = arith.addf %7, %8 : vector<16x128xf32>
    %10 = arith.mulf %9, %9 : vector<16x128xf32>
    %11 = arith.mulf %9, %10 : vector<16x128xf32>
    %cst_6 = arith.constant 4.471500e-02 : f32
    %12 = vector.broadcast %cst_6 : f32 to vector<16x128xf32>
    %13 = arith.mulf %12, %11 : vector<16x128xf32>
    %14 = arith.addf %9, %13 : vector<16x128xf32>
    %cst_7 = arith.constant 0.797884583 : f32
    %15 = vector.broadcast %cst_7 : f32 to vector<16x128xf32>
    %16 = arith.mulf %15, %14 : vector<16x128xf32>
    %17 = math.tanh %16 : vector<16x128xf32>
    %cst_8 = arith.constant 1.000000e+00 : f32
    %18 = vector.broadcast %cst_8 : f32 to vector<16x128xf32>
    %19 = arith.addf %18, %17 : vector<16x128xf32>
    %cst_9 = arith.constant 5.000000e-01 : f32
    %20 = vector.broadcast %cst_9 : f32 to vector<16x128xf32>
    %21 = arith.mulf %20, %19 : vector<16x128xf32>
    %22 = arith.mulf %9, %21 : vector<16x128xf32>
    %23 = arith.truncf %22 : vector<16x128xf32> to vector<16x128xbf16>
    %24 = arith.index_cast %c0_i32 : i32 to index
    %c0_10 = arith.constant 0 : index
    %c0_11 = arith.constant 0 : index
    %25 = vector.load %arg5[%24, %c0_10, %c0_11] : memref<4x128x16xbf16, #tpu.memory_space<vmem>>, vector<1x128x16xbf16>
    %26 = vector.shape_cast %25 : vector<1x128x16xbf16> to vector<128x16xbf16>
    %cst_12 = arith.constant dense<0.000000e+00> : vector<16x16xf32>
    %27 = tpu.matmul %23, %26, %cst_12 {dimension_numbers = #tpu.dot_dimension_numbers<[1], [0], [0], [1], [0, 0, 1, 1], [], []>} : vector<16x128xbf16>, vector<128x16xbf16>, vector<16x16xf32> -> vector<16x16xf32>
    %28 = arith.index_cast %c0_i32 : i32 to index
    %c0_13 = arith.constant 0 : index
    %29 = vector.load %arg6[%28, %c0_13] : memref<4x16xf32, #tpu.memory_space<vmem>>, vector<1x16xf32>
    %30 = vector.broadcast %29 : vector<1x16xf32> to vector<16x16xf32>
    %31 = arith.addf %27, %30 : vector<16x16xf32>
    %32 = arith.addf %0, %31 : vector<16x16xf32>
    %c1_i32 = arith.constant 1 : i32
    %33 = arith.truncf %32 : vector<16x16xf32> to vector<16x16xbf16>
    %c0_14 = arith.constant 0 : index
    %c0_15 = arith.constant 0 : index
    %34 = vector.load %arg4[%c0_14, %c0_15] : memref<16x128xbf16, #tpu.memory_space<vmem>>, vector<16x128xbf16>
    %cst_16 = arith.constant dense<0.000000e+00> : vector<16x128xf32>
    %35 = tpu.matmul %33, %34, %cst_16 {dimension_numbers = #tpu.dot_dimension_numbers<[1], [0], [0], [1], [0, 0, 1, 1], [], []>} : vector<16x16xbf16>, vector<16x128xbf16>, vector<16x128xf32> -> vector<16x128xf32>
    %36 = arith.index_cast %c1_i32 : i32 to index
    %c0_17 = arith.constant 0 : index
    %37 = vector.load %arg3[%36, %c0_17] : memref<4x128xf32, #tpu.memory_space<vmem>>, vector<1x128xf32>
    %38 = vector.broadcast %37 : vector<1x128xf32> to vector<16x128xf32>
    %39 = arith.addf %35, %38 : vector<16x128xf32>
    %c0_18 = arith.constant 0 : index
    %c0_19 = arith.constant 0 : index
    %40 = vector.load %arg2[%c0_18, %c0_19] : memref<16x128xf32, #tpu.memory_space<vmem>>, vector<16x128xf32>
    %41 = arith.addf %39, %40 : vector<16x128xf32>
    %42 = arith.mulf %41, %41 : vector<16x128xf32>
    %43 = arith.mulf %41, %42 : vector<16x128xf32>
    %cst_20 = arith.constant 4.471500e-02 : f32
    %44 = vector.broadcast %cst_20 : f32 to vector<16x128xf32>
    %45 = arith.mulf %44, %43 : vector<16x128xf32>
    %46 = arith.addf %41, %45 : vector<16x128xf32>
    %cst_21 = arith.constant 0.797884583 : f32
    %47 = vector.broadcast %cst_21 : f32 to vector<16x128xf32>
    %48 = arith.mulf %47, %46 : vector<16x128xf32>
    %49 = math.tanh %48 : vector<16x128xf32>
    %cst_22 = arith.constant 1.000000e+00 : f32
    %50 = vector.broadcast %cst_22 : f32 to vector<16x128xf32>
    %51 = arith.addf %50, %49 : vector<16x128xf32>
    %cst_23 = arith.constant 5.000000e-01 : f32
    %52 = vector.broadcast %cst_23 : f32 to vector<16x128xf32>
    %53 = arith.mulf %52, %51 : vector<16x128xf32>
    %54 = arith.mulf %41, %53 : vector<16x128xf32>
    %55 = arith.truncf %54 : vector<16x128xf32> to vector<16x128xbf16>
    %56 = arith.index_cast %c1_i32 : i32 to index
    %c0_24 = arith.constant 0 : index
    %c0_25 = arith.constant 0 : index
    %57 = vector.load %arg5[%56, %c0_24, %c0_25] : memref<4x128x16xbf16, #tpu.memory_space<vmem>>, vector<1x128x16xbf16>
    %58 = vector.shape_cast %57 : vector<1x128x16xbf16> to vector<128x16xbf16>
    %cst_26 = arith.constant dense<0.000000e+00> : vector<16x16xf32>
    %59 = tpu.matmul %55, %58, %cst_26 {dimension_numbers = #tpu.dot_dimension_numbers<[1], [0], [0], [1], [0, 0, 1, 1], [], []>} : vector<16x128xbf16>, vector<128x16xbf16>, vector<16x16xf32> -> vector<16x16xf32>
    %60 = arith.index_cast %c1_i32 : i32 to index
    %c0_27 = arith.constant 0 : index
    %61 = vector.load %arg6[%60, %c0_27] : memref<4x16xf32, #tpu.memory_space<vmem>>, vector<1x16xf32>
    %62 = vector.broadcast %61 : vector<1x16xf32> to vector<16x16xf32>
    %63 = arith.addf %59, %62 : vector<16x16xf32>
    %64 = arith.addf %32, %63 : vector<16x16xf32>
    %c2_i32 = arith.constant 2 : i32
    %65 = arith.truncf %64 : vector<16x16xf32> to vector<16x16xbf16>
    %c0_28 = arith.constant 0 : index
    %c0_29 = arith.constant 0 : index
    %66 = vector.load %arg4[%c0_28, %c0_29] : memref<16x128xbf16, #tpu.memory_space<vmem>>, vector<16x128xbf16>
    %cst_30 = arith.constant dense<0.000000e+00> : vector<16x128xf32>
    %67 = tpu.matmul %65, %66, %cst_30 {dimension_numbers = #tpu.dot_dimension_numbers<[1], [0], [0], [1], [0, 0, 1, 1], [], []>} : vector<16x16xbf16>, vector<16x128xbf16>, vector<16x128xf32> -> vector<16x128xf32>
    %68 = arith.index_cast %c2_i32 : i32 to index
    %c0_31 = arith.constant 0 : index
    %69 = vector.load %arg3[%68, %c0_31] : memref<4x128xf32, #tpu.memory_space<vmem>>, vector<1x128xf32>
    %70 = vector.broadcast %69 : vector<1x128xf32> to vector<16x128xf32>
    %71 = arith.addf %67, %70 : vector<16x128xf32>
    %c0_32 = arith.constant 0 : index
    %c0_33 = arith.constant 0 : index
    %72 = vector.load %arg2[%c0_32, %c0_33] : memref<16x128xf32, #tpu.memory_space<vmem>>, vector<16x128xf32>
    %73 = arith.addf %71, %72 : vector<16x128xf32>
    %74 = arith.mulf %73, %73 : vector<16x128xf32>
    %75 = arith.mulf %73, %74 : vector<16x128xf32>
    %cst_34 = arith.constant 4.471500e-02 : f32
    %76 = vector.broadcast %cst_34 : f32 to vector<16x128xf32>
    %77 = arith.mulf %76, %75 : vector<16x128xf32>
    %78 = arith.addf %73, %77 : vector<16x128xf32>
    %cst_35 = arith.constant 0.797884583 : f32
    %79 = vector.broadcast %cst_35 : f32 to vector<16x128xf32>
    %80 = arith.mulf %79, %78 : vector<16x128xf32>
    %81 = math.tanh %80 : vector<16x128xf32>
    %cst_36 = arith.constant 1.000000e+00 : f32
    %82 = vector.broadcast %cst_36 : f32 to vector<16x128xf32>
    %83 = arith.addf %82, %81 : vector<16x128xf32>
    %cst_37 = arith.constant 5.000000e-01 : f32
    %84 = vector.broadcast %cst_37 : f32 to vector<16x128xf32>
    %85 = arith.mulf %84, %83 : vector<16x128xf32>
    %86 = arith.mulf %73, %85 : vector<16x128xf32>
    %87 = arith.truncf %86 : vector<16x128xf32> to vector<16x128xbf16>
    %88 = arith.index_cast %c2_i32 : i32 to index
    %c0_38 = arith.constant 0 : index
    %c0_39 = arith.constant 0 : index
    %89 = vector.load %arg5[%88, %c0_38, %c0_39] : memref<4x128x16xbf16, #tpu.memory_space<vmem>>, vector<1x128x16xbf16>
    %90 = vector.shape_cast %89 : vector<1x128x16xbf16> to vector<128x16xbf16>
    %cst_40 = arith.constant dense<0.000000e+00> : vector<16x16xf32>
    %91 = tpu.matmul %87, %90, %cst_40 {dimension_numbers = #tpu.dot_dimension_numbers<[1], [0], [0], [1], [0, 0, 1, 1], [], []>} : vector<16x128xbf16>, vector<128x16xbf16>, vector<16x16xf32> -> vector<16x16xf32>
    %92 = arith.index_cast %c2_i32 : i32 to index
    %c0_41 = arith.constant 0 : index
    %93 = vector.load %arg6[%92, %c0_41] : memref<4x16xf32, #tpu.memory_space<vmem>>, vector<1x16xf32>
    %94 = vector.broadcast %93 : vector<1x16xf32> to vector<16x16xf32>
    %95 = arith.addf %91, %94 : vector<16x16xf32>
    %96 = arith.addf %64, %95 : vector<16x16xf32>
    %c3_i32 = arith.constant 3 : i32
    %97 = arith.truncf %96 : vector<16x16xf32> to vector<16x16xbf16>
    %c0_42 = arith.constant 0 : index
    %c0_43 = arith.constant 0 : index
    %98 = vector.load %arg4[%c0_42, %c0_43] : memref<16x128xbf16, #tpu.memory_space<vmem>>, vector<16x128xbf16>
    %cst_44 = arith.constant dense<0.000000e+00> : vector<16x128xf32>
    %99 = tpu.matmul %97, %98, %cst_44 {dimension_numbers = #tpu.dot_dimension_numbers<[1], [0], [0], [1], [0, 0, 1, 1], [], []>} : vector<16x16xbf16>, vector<16x128xbf16>, vector<16x128xf32> -> vector<16x128xf32>
    %100 = arith.index_cast %c3_i32 : i32 to index
    %c0_45 = arith.constant 0 : index
    %101 = vector.load %arg3[%100, %c0_45] : memref<4x128xf32, #tpu.memory_space<vmem>>, vector<1x128xf32>
    %102 = vector.broadcast %101 : vector<1x128xf32> to vector<16x128xf32>
    %103 = arith.addf %99, %102 : vector<16x128xf32>
    %c0_46 = arith.constant 0 : index
    %c0_47 = arith.constant 0 : index
    %104 = vector.load %arg2[%c0_46, %c0_47] : memref<16x128xf32, #tpu.memory_space<vmem>>, vector<16x128xf32>
    %105 = arith.addf %103, %104 : vector<16x128xf32>
    %106 = arith.mulf %105, %105 : vector<16x128xf32>
    %107 = arith.mulf %105, %106 : vector<16x128xf32>
    %cst_48 = arith.constant 4.471500e-02 : f32
    %108 = vector.broadcast %cst_48 : f32 to vector<16x128xf32>
    %109 = arith.mulf %108, %107 : vector<16x128xf32>
    %110 = arith.addf %105, %109 : vector<16x128xf32>
    %cst_49 = arith.constant 0.797884583 : f32
    %111 = vector.broadcast %cst_49 : f32 to vector<16x128xf32>
    %112 = arith.mulf %111, %110 : vector<16x128xf32>
    %113 = math.tanh %112 : vector<16x128xf32>
    %cst_50 = arith.constant 1.000000e+00 : f32
    %114 = vector.broadcast %cst_50 : f32 to vector<16x128xf32>
    %115 = arith.addf %114, %113 : vector<16x128xf32>
    %cst_51 = arith.constant 5.000000e-01 : f32
    %116 = vector.broadcast %cst_51 : f32 to vector<16x128xf32>
    %117 = arith.mulf %116, %115 : vector<16x128xf32>
    %118 = arith.mulf %105, %117 : vector<16x128xf32>
    %119 = arith.truncf %118 : vector<16x128xf32> to vector<16x128xbf16>
    %120 = arith.index_cast %c3_i32 : i32 to index
    %c0_52 = arith.constant 0 : index
    %c0_53 = arith.constant 0 : index
    %121 = vector.load %arg5[%120, %c0_52, %c0_53] : memref<4x128x16xbf16, #tpu.memory_space<vmem>>, vector<1x128x16xbf16>
    %122 = vector.shape_cast %121 : vector<1x128x16xbf16> to vector<128x16xbf16>
    %cst_54 = arith.constant dense<0.000000e+00> : vector<16x16xf32>
    %123 = tpu.matmul %119, %122, %cst_54 {dimension_numbers = #tpu.dot_dimension_numbers<[1], [0], [0], [1], [0, 0, 1, 1], [], []>} : vector<16x128xbf16>, vector<128x16xbf16>, vector<16x16xf32> -> vector<16x16xf32>
    %124 = arith.index_cast %c3_i32 : i32 to index
    %c0_55 = arith.constant 0 : index
    %125 = vector.load %arg6[%124, %c0_55] : memref<4x16xf32, #tpu.memory_space<vmem>>, vector<1x16xf32>
    %126 = vector.broadcast %125 : vector<1x16xf32> to vector<16x16xf32>
    %127 = arith.addf %123, %126 : vector<16x16xf32>
    %128 = arith.addf %96, %127 : vector<16x16xf32>
    %c4_i32 = arith.constant 4 : i32
    %129 = arith.truncf %128 : vector<16x16xf32> to vector<16x16xbf16>
    %c0_56 = arith.constant 0 : index
    %c0_57 = arith.constant 0 : index
    %130 = vector.load %arg7[%c0_56, %c0_57] : memref<16x32xbf16, #tpu.memory_space<vmem>>, vector<16x32xbf16>
    %cst_58 = arith.constant dense<0.000000e+00> : vector<16x32xf32>
    %131 = tpu.matmul %129, %130, %cst_58 {dimension_numbers = #tpu.dot_dimension_numbers<[1], [0], [0], [1], [0, 0, 1, 1], [], []>} : vector<16x16xbf16>, vector<16x32xbf16>, vector<16x32xf32> -> vector<16x32xf32>
    %c0_59 = arith.constant 0 : index
    %c0_60 = arith.constant 0 : index
    %132 = vector.load %arg8[%c0_59, %c0_60] : memref<1x32xf32, #tpu.memory_space<vmem>>, vector<1x32xf32>
    %133 = vector.broadcast %132 : vector<1x32xf32> to vector<16x32xf32>
    %134 = arith.addf %131, %133 : vector<16x32xf32>
    %135 = math.tanh %134 : vector<16x32xf32>
    %c0_61 = arith.constant 0 : index
    %c0_62 = arith.constant 0 : index
    %136 = vector.load %arg9[%c0_61, %c0_62] : memref<16x32xf32, #tpu.memory_space<vmem>>, vector<16x32xf32>
    tpu.vector_store %arg9[%c0_61, %c0_62], %135 {strides = array<i32>} : memref<16x32xf32, #tpu.memory_space<vmem>>, vector<16x32xf32>,
    return
  }
  func.func @transform_0(%arg0: i32) -> (i32, i32) {
    %c0_i32 = arith.constant 0 : i32
    %c0_i32_0 = arith.constant 0 : i32
    return %arg0, %c0_i32 : i32, i32
  }
  func.func @transform_1(%arg0: i32) -> (i32, i32) {
    %c0_i32 = arith.constant 0 : i32
    %c0_i32_0 = arith.constant 0 : i32
    return %arg0, %c0_i32 : i32, i32
  }
  func.func @transform_2(%arg0: i32) -> (i32, i32) {
    %c0_i32 = arith.constant 0 : i32
    %c0_i32_0 = arith.constant 0 : i32
    %c0_i32_1 = arith.constant 0 : i32
    return %c0_i32, %c0_i32_0 : i32, i32
  }
  func.func @transform_3(%arg0: i32) -> (i32, i32) {
    %c0_i32 = arith.constant 0 : i32
    %c0_i32_0 = arith.constant 0 : i32
    %c0_i32_1 = arith.constant 0 : i32
    return %c0_i32, %c0_i32_0 : i32, i32
  }
  func.func @transform_4(%arg0: i32) -> (i32, i32, i32) {
    %c0_i32 = arith.constant 0 : i32
    %c0_i32_0 = arith.constant 0 : i32
    %c0_i32_1 = arith.constant 0 : i32
    %c0_i32_2 = arith.constant 0 : i32
    return %c0_i32, %c0_i32_0, %c0_i32_1 : i32, i32, i32
  }
  func.func @transform_5(%arg0: i32) -> (i32, i32) {
    %c0_i32 = arith.constant 0 : i32
    %c0_i32_0 = arith.constant 0 : i32
    %c0_i32_1 = arith.constant 0 : i32
    return %c0_i32, %c0_i32_0 : i32, i32
  }
  func.func @transform_6(%arg0: i32) -> (i32, i32) {
    %c0_i32 = arith.constant 0 : i32
    %c0_i32_0 = arith.constant 0 : i32
    %c0_i32_1 = arith.constant 0 : i32
    return %c0_i32, %c0_i32_0 : i32, i32
  }
  func.func @transform_7(%arg0: i32) -> (i32, i32) {
    %c0_i32 = arith.constant 0 : i32
    %c0_i32_0 = arith.constant 0 : i32
    %c0_i32_1 = arith.constant 0 : i32
    return %c0_i32, %c0_i32_0 : i32, i32
  }
  func.func @transform_8(%arg0: i32) -> (i32, i32) {
    %c0_i32 = arith.constant 0 : i32
    %c0_i32_0 = arith.constant 0 : i32
    return %arg0, %c0_i32 : i32, i32
  }
}

</mosaic_0001>

<llo_original>
// kernel: _forward_impl.1
$region0: #{_forward_impl.1}
  #allocation0 [shape = 'u32[]', space=smem, size = 0x4, offset = 0x4, fixed_abs, tag = 'smem constant byte address 0x4 - core index']
  #allocation1 [shape = 'u32[144,128]{1,0:T(1,128)}', space=vmem, size = 0x12000, scoped, tag = 'internal scratch']
  %s0 = inlined_call_operand.vmem [shape: f32[32,16], index: 0, kind: input, shape index: {}]
  %s1 = inlined_call_operand.vmem [shape: f32[32,128], index: 1, kind: input, shape index: {}]
  %s2 = inlined_call_operand.vmem [shape: f32[4,128], index: 2, kind: input, shape index: {}]
  %s3 = inlined_call_operand.vmem [shape: bf16[16,128], index: 3, kind: input, shape index: {}]
  %s4 = inlined_call_operand.vmem [shape: bf16[4,128,16], index: 4, kind: input, shape index: {}]
  %s5 = inlined_call_operand.vmem [shape: f32[4,16], index: 5, kind: input, shape index: {}]
  %s6 = inlined_call_operand.vmem [shape: bf16[16,32], index: 6, kind: input, shape index: {}]
  %s7 = inlined_call_operand.vmem [shape: f32[1,32], index: 7, kind: input, shape index: {}]
  %s8 = inlined_call_operand.vmem [shape: f32[32,32], index: 8, kind: output, shape index: {}]
  %s9 = sld [smem:[#allocation0]]
  $region65: #{_forward_impl.1} parent=0
    _
  %s11 = ssub.s32 1, %s9
  %s12 = scalar_select 0, %s11, %s9
  loop: start=0, step=1, limit=4
  $region2: #{_forward_impl.1} parent=0 // loop_pre_header
    _
  $region3: #{_forward_impl.1} parent=0 // loop_header
    %s14 = sphi 0, %s18
    %p15 = scmp.ge.s32.totalorder %s14, 4
    %s24 = sphi 0, %s26
    %s27 = sphi 0, %s24
    %s28 = sphi 0, %s27
    %s44 = sphi 0, %s28
    %s50 = sphi 0, %s52
    %s53 = sphi 0, %s50
    %s54 = sphi 0, %s53
    %s70 = sphi 0, %s54
    %s74 = sphi 0, %s74
    %s76 = sphi 0, %s74
    %s77 = sphi 0, %s76
    %s91 = sphi 0, %s77
    %s95 = sphi 0, %s95
    %s97 = sphi 0, %s95
    %s98 = sphi 0, %s97
    %s112 = sphi 0, %s98
    %s116 = sphi 0, %s116
    %s118 = sphi 0, %s116
    %s119 = sphi 0, %s118
    %s133 = sphi 0, %s119
    %s137 = sphi 0, %s137
    %s139 = sphi 0, %s137
    %s140 = sphi 0, %s139
    %s154 = sphi 0, %s140
    %s158 = sphi 0, %s158
    %s160 = sphi 0, %s158
    %s161 = sphi 0, %s160
    %s175 = sphi 0, %s161
    %s179 = sphi 0, %s179
    %s181 = sphi 0, %s179
    %s182 = sphi 0, %s181
    %s196 = sphi 0, %s182
    %s202 = sphi 0, %s204
    %s205 = sphi 0, %s202
    %s206 = sphi 0, %s205
    %s222 = sphi 0, %s206
  $region4: #{_forward_impl.1} parent=0 // loop_header_branch
    %17 = sbr.rel (%p15) target = $region8
  $region5: #{_forward_impl.1} parent=0 // loop_body
    %s19 = ssub.s32 %s14, 1
    %s20 = ssub.s32 %s14, 2
    %s21 = sadd.s32 %s14, 1
    %s22 = ssub.s32 %s14, %s21
    %p23 = scmp.eq.s32.totalorder %s22, 0
    %s25 = sadd.s32 %s24, 1
    %s26 = scalar_select %p23, %s24, %s25
    %p29 = pneg %p23
    %p30 = scmp.eq.s32.totalorder %s14, 1
    %p31 = por %p29, %p30
    %p32 = scmp.ne.s32.totalorder %s24, %s27
    %p33 = scmp.eq.s32.totalorder %s14, 0
    %p34 = por %p32, %p33
    %p35 = scmp.ne.s32.totalorder %s24, %s27
    %p36 = scmp.eq.s32.totalorder %s19, 1
    %p37 = por %p35, %p36
    %p38 = scmp.ne.s32.totalorder %s27, %s28
    %p39 = scmp.eq.s32.totalorder %s19, 0
    %p40 = por %p38, %p39
    %p41 = scmp.ne.s32.totalorder %s27, %s28
    %p42 = scmp.eq.s32.totalorder %s20, 1
    %p43 = por %p41, %p42
    %p45 = scmp.ne.s32.totalorder %s28, %s44
    %p46 = scmp.eq.s32.totalorder %s20, 0
    %p47 = por %p45, %p46
    %s48 = ssub.s32 %s14, %s21
    %p49 = scmp.eq.s32.totalorder %s48, 0
    %s51 = sadd.s32 %s50, 1
    %s52 = scalar_select %p49, %s50, %s51
    %p55 = pneg %p49
    %p56 = scmp.eq.s32.totalorder %s14, 1
    %p57 = por %p55, %p56
    %p58 = scmp.ne.s32.totalorder %s50, %s53
    %p59 = scmp.eq.s32.totalorder %s14, 0
    %p60 = por %p58, %p59
    %p61 = scmp.ne.s32.totalorder %s50, %s53
    %p62 = scmp.eq.s32.totalorder %s19, 1
    %p63 = por %p61, %p62
    %p64 = scmp.ne.s32.totalorder %s53, %s54
    %p65 = scmp.eq.s32.totalorder %s19, 0
    %p66 = por %p64, %p65
    %p67 = scmp.ne.s32.totalorder %s53, %s54
    %p68 = scmp.eq.s32.totalorder %s20, 1
    %p69 = por %p67, %p68
    %p71 = scmp.ne.s32.totalorder %s54, %s70
    %p72 = scmp.eq.s32.totalorder %s20, 0
    %p73 = por %p71, %p72
    %s75 = sadd.s32 %s74, 1
    %p78 = scmp.eq.s32.totalorder %s14, 1
    %p79 = scmp.ne.s32.totalorder %s74, %s76
    %p80 = scmp.eq.s32.totalorder %s14, 0
    %p81 = por %p79, %p80
    %p82 = scmp.ne.s32.totalorder %s74, %s76
    %p83 = scmp.eq.s32.totalorder %s19, 1
    %p84 = por %p82, %p83
    %p85 = scmp.ne.s32.totalorder %s76, %s77
    %p86 = scmp.eq.s32.totalorder %s19, 0
    %p87 = por %p85, %p86
    %p88 = scmp.ne.s32.totalorder %s76, %s77
    %p89 = scmp.eq.s32.totalorder %s20, 1
    %p90 = por %p88, %p89
    %p92 = scmp.ne.s32.totalorder %s77, %s91
    %p93 = scmp.eq.s32.totalorder %s20, 0
    %p94 = por %p92, %p93
    %s96 = sadd.s32 %s95, 1
    %p99 = scmp.eq.s32.totalorder %s14, 1
    %p100 = scmp.ne.s32.totalorder %s95, %s97
    %p101 = scmp.eq.s32.totalorder %s14, 0
    %p102 = por %p100, %p101
    %p103 = scmp.ne.s32.totalorder %s95, %s97
    %p104 = scmp.eq.s32.totalorder %s19, 1
    %p105 = por %p103, %p104
    %p106 = scmp.ne.s32.totalorder %s97, %s98
    %p107 = scmp.eq.s32.totalorder %s19, 0
    %p108 = por %p106, %p107
    %p109 = scmp.ne.s32.totalorder %s97, %s98
    %p110 = scmp.eq.s32.totalorder %s20, 1
    %p111 = por %p109, %p110
    %p113 = scmp.ne.s32.totalorder %s98, %s112
    %p114 = scmp.eq.s32.totalorder %s20, 0
    %p115 = por %p113, %p114
    %s117 = sadd.s32 %s116, 1
    %p120 = scmp.eq.s32.totalorder %s14, 1
    %p121 = scmp.ne.s32.totalorder %s116, %s118
    %p122 = scmp.eq.s32.totalorder %s14, 0
    %p123 = por %p121, %p122
    %p124 = scmp.ne.s32.totalorder %s116, %s118
    %p125 = scmp.eq.s32.totalorder %s19, 1
    %p126 = por %p124, %p125
    %p127 = scmp.ne.s32.totalorder %s118, %s119
    %p128 = scmp.eq.s32.totalorder %s19, 0
    %p129 = por %p127, %p128
    %p130 = scmp.ne.s32.totalorder %s118, %s119
    %p131 = scmp.eq.s32.totalorder %s20, 1
    %p132 = por %p130, %p131
    %p134 = scmp.ne.s32.totalorder %s119, %s133
    %p135 = scmp.eq.s32.totalorder %s20, 0
    %p136 = por %p134, %p135
    %s138 = sadd.s32 %s137, 1
    %p141 = scmp.eq.s32.totalorder %s14, 1
    %p142 = scmp.ne.s32.totalorder %s137, %s139
    %p143 = scmp.eq.s32.totalorder %s14, 0
    %p144 = por %p142, %p143
    %p145 = scmp.ne.s32.totalorder %s137, %s139
    %p146 = scmp.eq.s32.totalorder %s19, 1
    %p147 = por %p145, %p146
    %p148 = scmp.ne.s32.totalorder %s139, %s140
    %p149 = scmp.eq.s32.totalorder %s19, 0
    %p150 = por %p148, %p149
    %p151 = scmp.ne.s32.totalorder %s139, %s140
    %p152 = scmp.eq.s32.totalorder %s20, 1
    %p153 = por %p151, %p152
    %p155 = scmp.ne.s32.totalorder %s140, %s154
    %p156 = scmp.eq.s32.totalorder %s20, 0
    %p157 = por %p155, %p156
    %s159 = sadd.s32 %s158, 1
    %p162 = scmp.eq.s32.totalorder %s14, 1
    %p163 = scmp.ne.s32.totalorder %s158, %s160
    %p164 = scmp.eq.s32.totalorder %s14, 0
    %p165 = por %p163, %p164
    %p166 = scmp.ne.s32.totalorder %s158, %s160
    %p167 = scmp.eq.s32.totalorder %s19, 1
    %p168 = por %p166, %p167
    %p169 = scmp.ne.s32.totalorder %s160, %s161
    %p170 = scmp.eq.s32.totalorder %s19, 0
    %p171 = por %p169, %p170
    %p172 = scmp.ne.s32.totalorder %s160, %s161
    %p173 = scmp.eq.s32.totalorder %s20, 1
    %p174 = por %p172, %p173
    %p176 = scmp.ne.s32.totalorder %s161, %s175
    %p177 = scmp.eq.s32.totalorder %s20, 0
    %p178 = por %p176, %p177
    %s180 = sadd.s32 %s179, 1
    %p183 = scmp.eq.s32.totalorder %s14, 1
    %p184 = scmp.ne.s32.totalorder %s179, %s181
    %p185 = scmp.eq.s32.totalorder %s14, 0
    %p186 = por %p184, %p185
    %p187 = scmp.ne.s32.totalorder %s179, %s181
    %p188 = scmp.eq.s32.totalorder %s19, 1
    %p189 = por %p187, %p188
    %p190 = scmp.ne.s32.totalorder %s181, %s182
    %p191 = scmp.eq.s32.totalorder %s19, 0
    %p192 = por %p190, %p191
    %p193 = scmp.ne.s32.totalorder %s181, %s182
    %p194 = scmp.eq.s32.totalorder %s20, 1
    %p195 = por %p193, %p194
    %p197 = scmp.ne.s32.totalorder %s182, %s196
    %p198 = scmp.eq.s32.totalorder %s20, 0
    %p199 = por %p197, %p198
    %s200 = ssub.s32 %s14, %s21
    %p201 = scmp.eq.s32.totalorder %s200, 0
    %s203 = sadd.s32 %s202, 1
    %s204 = scalar_select %p201, %s202, %s203
    %p207 = pneg %p201
    %p208 = scmp.eq.s32.totalorder %s14, 1
    %p209 = por %p207, %p208
    %p210 = scmp.ne.s32.totalorder %s202, %s205
    %p211 = scmp.eq.s32.totalorder %s14, 0
    %p212 = por %p210, %p211
    %p213 = scmp.ne.s32.totalorder %s202, %s205
    %p214 = scmp.eq.s32.totalorder %s19, 1
    %p215 = por %p213, %p214
    %p216 = scmp.ne.s32.totalorder %s205, %s206
    %p217 = scmp.eq.s32.totalorder %s19, 0
    %p218 = por %p216, %p217
    %p219 = scmp.ne.s32.totalorder %s205, %s206
    %p220 = scmp.eq.s32.totalorder %s20, 1
    %p221 = por %p219, %p220
    %p223 = scmp.ne.s32.totalorder %s206, %s222
    %p224 = scmp.eq.s32.totalorder %s20, 0
    %p225 = por %p223, %p224
    %p226 = scmp.le.s32.totalorder 1, %s14
    %p227 = scmp.lt.s32.totalorder %s14, 3
    %p228 = pnand %p226, %p227
    %p229 = pneg %p228
    // Predicated region
    $region9: #{_forward_impl.1} parent=5 // pred_check
      _
    $region10: #{_forward_impl.1} parent=5 // pred_check_branch
      %231 = sbr.rel (%p228) target = $region12
    $region11: #{_forward_impl.1} parent=5 // pred_region
      %s232 = ssub.s32 %s14, 1
      // Predicated region
      $region13: #{_forward_impl.1} parent=11 // pred_check
        %p233 = pneg %p87
      $region14: #{_forward_impl.1} parent=11 // pred_check_branch
        %235 = sbr.rel (%p233) target = $region16
      $region15: #{_forward_impl.1} parent=11 // pred_region
        _
      $region16: #{_forward_impl.1} parent=11 // pred_fallthru
        _
      // Predicated region
      $region17: #{_forward_impl.1} parent=11 // pred_check
        %p236 = pneg %p108
      $region18: #{_forward_impl.1} parent=11 // pred_check_branch
        %238 = sbr.rel (%p236) target = $region20
      $region19: #{_forward_impl.1} parent=11 // pred_region
        _
      $region20: #{_forward_impl.1} parent=11 // pred_fallthru
        _
      // Predicated region
      $region21: #{_forward_impl.1} parent=11 // pred_check
        %p239 = pneg %p129
      $region22: #{_forward_impl.1} parent=11 // pred_check_branch
        %241 = sbr.rel (%p239) target = $region24
      $region23: #{_forward_impl.1} parent=11 // pred_region
        _
      $region24: #{_forward_impl.1} parent=11 // pred_fallthru
        _
      // Predicated region
      $region25: #{_forward_impl.1} parent=11 // pred_check
        %p242 = pneg %p150
      $region26: #{_forward_impl.1} parent=11 // pred_check_branch
        %244 = sbr.rel (%p242) target = $region28
      $region27: #{_forward_impl.1} parent=11 // pred_region
        _
      $region28: #{_forward_impl.1} parent=11 // pred_fallthru
        _
      // Predicated region
      $region29: #{_forward_impl.1} parent=11 // pred_check
        %p245 = pneg %p171
      $region30: #{_forward_impl.1} parent=11 // pred_check_branch
        %247 = sbr.rel (%p245) target = $region32
      $region31: #{_forward_impl.1} parent=11 // pred_region
        _
      $region32: #{_forward_impl.1} parent=11 // pred_fallthru
        _
      // Predicated region
      $region33: #{_forward_impl.1} parent=11 // pred_check
        %p248 = pneg %p192
      $region34: #{_forward_impl.1} parent=11 // pred_check_branch
        %250 = sbr.rel (%p248) target = $region36
      $region35: #{_forward_impl.1} parent=11 // pred_region
        _
      $region36: #{_forward_impl.1} parent=11 // pred_fallthru
        _
    $region12: #{_forward_impl.1} parent=5 // pred_fallthru
      _
    %p251 = scmp.lt.s32.totalorder %s14, 2
    // Predicated region
    $region37: #{_forward_impl.1} parent=5 // pred_check
      %p252 = pneg %p251
    $region38: #{_forward_impl.1} parent=5 // pred_check_branch
      %254 = sbr.rel (%p252) target = $region40
    $region39: #{_forward_impl.1} parent=5 // pred_region
      // Predicated region
      $region41: #{_forward_impl.1} parent=39 // pred_check
        %p255 = pneg %p34
      $region42: #{_forward_impl.1} parent=39 // pred_check_branch
        %257 = sbr.rel (%p255) target = $region44
      $region43: #{_forward_impl.1} parent=39 // pred_region
        %s258 = smul.u32 2, %s14
        %p259 = scmp.lt.s32.totalorder %s258, 3
        %s260 = scalar_select %p259, %s258, 3
        %s261 = smul.addr %s260, 8
        %s262 = scalar_lea.vmem %s0, %s261
        %s263 = smul.u32 2, %s14
      $region44: #{_forward_impl.1} parent=39 // pred_fallthru
        _
      // Predicated region
      $region45: #{_forward_impl.1} parent=39 // pred_check
        %p264 = pneg %p60
      $region46: #{_forward_impl.1} parent=39 // pred_check_branch
        %266 = sbr.rel (%p264) target = $region48
      $region47: #{_forward_impl.1} parent=39 // pred_region
        %s267 = smul.u32 2, %s14
        %p268 = scmp.lt.s32.totalorder %s267, 3
        %s269 = scalar_select %p268, %s267, 3
        %s270 = smul.addr %s269, 8
        %s271 = scalar_lea.vmem %s1, %s270
        %s272 = smul.u32 2, %s14
      $region48: #{_forward_impl.1} parent=39 // pred_fallthru
        _
    $region40: #{_forward_impl.1} parent=5 // pred_fallthru
      _
    %p273 = scmp.le.s32.totalorder 1, %s14
    %p274 = scmp.lt.s32.totalorder %s14, 3
    %p275 = pnand %p273, %p274
    %p276 = pneg %p275
    // Predicated region
    $region49: #{_forward_impl.1} parent=5 // pred_check
      _
    $region50: #{_forward_impl.1} parent=5 // pred_check_branch
      %278 = sbr.rel (%p275) target = $region52
    $region51: #{_forward_impl.1} parent=5 // pred_region
      %s279 = ssub.s32 %s14, 1
      %s280 = smul.u32 2, %s19
      %p281 = scmp.lt.s32.totalorder %s280, 3
      %s282 = scalar_select %p281, %s280, 3
      %s283 = smul.addr %s282, 8
      %s284 = scalar_lea.vmem %s0, %s283
      %p285 = pneg %p40
      %p286 = pneg %p37
      %s287 = smul.u32 2, %s19
      %p288 = scmp.lt.s32.totalorder %s287, 3
      %s289 = scalar_select %p288, %s287, 3
      %s290 = smul.addr %s289, 8
      %s291 = scalar_lea.vmem %s1, %s290
      %p292 = pneg %p66
      %p293 = pneg %p63
      %p294 = pneg %p87
      %p295 = pneg %p84
      %p296 = pneg %p108
      %p297 = pneg %p105
      %p298 = pneg %p129
      %p299 = pneg %p126
      %p300 = pneg %p150
      %p301 = pneg %p147
      %p302 = pneg %p171
      %p303 = pneg %p168
      %p304 = pneg %p192
      %p305 = pneg %p189
      %p306 = pneg %p218
      %p307 = pneg %p215
      %s308 = smul.u32 2, %s19
      %p309 = scmp.lt.s32.totalorder %s308, 3
      %s310 = scalar_select %p309, %s308, 3
      %s311 = smul.addr %s310, 8
      %s312 = scalar_lea.vmem %s8, %s311
      %s313 = smul.u32 2, %s19
      %p314 = scmp.lt.s32.totalorder %s313, 3
      %s315 = scalar_select %p314, %s313, 3
      %s316 = smul.addr %s315, 8
      %s317 = scalar_lea.vmem %s0, %s316
      %s318 = smul.u32 2, %s19
      %s319 = smul.u32 2, %s19
      %p320 = scmp.lt.s32.totalorder %s319, 3
      %s321 = scalar_select %p320, %s319, 3
      %s322 = smul.addr %s321, 8
      %s323 = scalar_lea.vmem %s1, %s322
      %s324 = smul.u32 2, %s19
      %s325 = smul.u32 2, %s19
      %p326 = scmp.lt.s32.totalorder %s325, 3
      %s327 = scalar_select %p326, %s325, 3
      %s328 = smul.addr %s327, 8
      %s329 = scalar_lea.vmem %s8, %s328
      %s330 = smul.u32 2, %s19
      %v332 = vld [vmem:[%s317] sm:$0xff]
      %v333 = vld [vmem:[%s317 + $0x8] sm:$0xff]
      %v334 = vpack.c.bf16 %v333, %v332
      %v335 = vld [vmem:[%s3] sm:$0xf]
      %v336 = vld [vmem:[%s3 + $0x4] sm:$0xf]
      %v337 = vld [vmem:[%s2] sm:$0x1]
      %v338 = vlaneseq
      %v339 = vshrl.u32 %v338, 7
      %v340 = vsub.s32 0, %v339
      %v341 = vrot.slane %v337, %v340
      %v344 = vunpack.c.l.b16 %v335
      %v345 = vunpack.c.l.b16 %v336
      %v346 = vpack.c.b16 %v345, %v344
      %vm348 = vcmask 130048
      %v350 = vsel %vm348, %v334, 0
      %352 = vmatprep.subr.bf16.mxu0 0
      %353 = vmatpush1.bf16.msra.mxu0 %v346
      %354 = vmatprep.subr.bf16.mxu0 0
      %355 = vmatpush1.bf16.msra.mxu0 0
      %356 = vmatprep.subr.bf16.mxu0 0
      %357 = vmatpush1.bf16.msra.mxu0 0
      %358 = vmatprep.subr.bf16.mxu0 0
      %359 = vmatpush1.bf16.msra.mxu0 0
      %360 = vmatprep.subr.bf16.mxu0 0
      %361 = vmatpush1.bf16.msra.mxu0 0
      %362 = vmatprep.subr.bf16.mxu0 0
      %363 = vmatpush1.bf16.msra.mxu0 0
      %364 = vmatprep.subr.bf16.mxu0 0
      %365 = vmatpush1.bf16.msra.mxu0 0
      %366 = vmatprep.subr.bf16.mxu0 0
      %367 = vmatpush1.bf16.msra.mxu0 0
      %368 = vmatprep.subr.bf16.mxu0 0
      %369 = vmatpush1.bf16.msra.mxu0 0
      %370 = vmatprep.subr.bf16.mxu0 0
      %371 = vmatpush1.bf16.msra.mxu0 0
      %372 = vmatprep.subr.bf16.mxu0 0
      %373 = vmatpush1.bf16.msra.mxu0 0
      %374 = vmatprep.subr.bf16.mxu0 0
      %375 = vmatpush1.bf16.msra.mxu0 0
      %376 = vmatprep.subr.bf16.mxu0 0
      %377 = vmatpush1.bf16.msra.mxu0 0
      %378 = vmatprep.subr.bf16.mxu0 0
      %379 = vmatpush1.bf16.msra.mxu0 0
      %380 = vmatprep.subr.bf16.mxu0 0
      %381 = vmatpush1.bf16.msra.mxu0 0
      %382 = vmatprep.subr.bf16.mxu0 0
      %383 = vmatpush1.bf16.msra.mxu0 0
      %384 = vmatprep.mubr.bf16.mxu0 0
      %385 = vmatmul.mubr.bf16.gmra.mrb[0].mxu0 %v350
      %v386 = vpop.f32.mrb[0].mxu0
      %v387 = vadd.f32 %v341, %v386
      %v388 = vpop.f32.mrb[0].mxu0
      %v389 = vpop.f32.mrb[0].mxu0
      %v390 = vadd.f32 %v341, %v389
      %v391 = vpop.f32.mrb[0].mxu0
      %392 = vdwg.mxu0
      %v393 = vld [vmem:[%s323] sm:$0xff]
      %v394 = vld [vmem:[%s323 + $0x8] sm:$0xff]
      %v395 = vadd.f32 %v387, %v393
      %v396 = vadd.f32 %v390, %v394
      %v397 = vmul.f32 %v395, %v395
      %v398 = vmul.f32 %v396, %v396
      %v399 = vmul.f32 %v395, %v397
      %v400 = vmul.f32 %v396, %v398
      %v401 = vmul.f32 %v399, 0.044715
      %v402 = vmul.f32 %v400, 0.044715
      %v403 = vadd.f32 %v395, %v401
      %v404 = vadd.f32 %v396, %v402
      %v405 = vmul.f32 %v403, 0.7978846
      %v406 = vmul.f32 %v404, 0.7978846
      %v407 = vtanh.pop %v405
      %v408 = vtanh.pop %v406
      %v409 = vadd.f32 %v407, 1.0
      %v410 = vadd.f32 %v408, 1.0
      %v411 = vmul.f32 %v409, 0.5
      %v412 = vmul.f32 %v410, 0.5
      %v413 = vmul.f32 %v395, %v411
      %v414 = vmul.f32 %v396, %v412
      %v415 = vpack.c.bf16 %v414, %v413
      %v416 = vld [vmem:[%s4] sm:$0xf]
      %v417 = vld [vmem:[%s4 + $0x4] sm:$0xf]
      %v418 = vld [vmem:[%s4 + $0x8] sm:$0xf]
      %v419 = vld [vmem:[%s4 + $0xc] sm:$0xf]
      %v420 = vld [vmem:[%s4 + $0x10] sm:$0xf]
      %v421 = vld [vmem:[%s4 + $0x14] sm:$0xf]
      %v422 = vld [vmem:[%s4 + $0x18] sm:$0xf]
      %v423 = vld [vmem:[%s4 + $0x1c] sm:$0xf]
      %v424 = vld [vmem:[%s4 + $0x20] sm:$0xf]
      %v425 = vld [vmem:[%s4 + $0x24] sm:$0xf]
      %v426 = vld [vmem:[%s4 + $0x28] sm:$0xf]
      %v427 = vld [vmem:[%s4 + $0x2c] sm:$0xf]
      %v428 = vld [vmem:[%s4 + $0x30] sm:$0xf]
      %v429 = vld [vmem:[%s4 + $0x34] sm:$0xf]
      %v430 = vld [vmem:[%s4 + $0x38] sm:$0xf]
      %v431 = vld [vmem:[%s4 + $0x3c] sm:$0xf]
      %v432 = vld [vmem:[%s5] sm:$0x1]
      %v433 = vlaneseq
      %v434 = vshrl.u32 %v433, 7
      %v435 = vsub.s32 0, %v434
      %v436 = vrot.slane %v432, %v435
      %v453 = vunpack.c.l.b16 %v416
      %v454 = vunpack.c.l.b16 %v417
      %v455 = vunpack.c.l.b16 %v418
      %v456 = vunpack.c.l.b16 %v419
      %v457 = vunpack.c.l.b16 %v420
      %v458 = vunpack.c.l.b16 %v421
      %v459 = vunpack.c.l.b16 %v422
      %v460 = vunpack.c.l.b16 %v423
      %v461 = vunpack.c.l.b16 %v424
      %v462 = vunpack.c.l.b16 %v425
      %v463 = vunpack.c.l.b16 %v426
      %v464 = vunpack.c.l.b16 %v427
      %v465 = vunpack.c.l.b16 %v428
      %v466 = vunpack.c.l.b16 %v429
      %v467 = vunpack.c.l.b16 %v430
      %v468 = vunpack.c.l.b16 %v431
      %v469 = vpack.c.b16 %v454, %v453
      %v470 = vpack.c.b16 %v456, %v455
      %v471 = vpack.c.b16 %v458, %v457
      %v472 = vpack.c.b16 %v460, %v459
      %v473 = vpack.c.b16 %v462, %v461
      %v474 = vpack.c.b16 %v464, %v463
      %v475 = vpack.c.b16 %v466, %v465
      %v476 = vpack.c.b16 %v468, %v467
      %485 = vmatprep.subr.bf16.mxu0 0
      %486 = vmatpush1.bf16.msra.mxu0 %v469
      %487 = vmatprep.subr.bf16.mxu0 0
      %488 = vmatpush1.bf16.msra.mxu0 %v470
      %489 = vmatprep.subr.bf16.mxu0 0
      %490 = vmatpush1.bf16.msra.mxu0 %v471
      %491 = vmatprep.subr.bf16.mxu0 0
      %492 = vmatpush1.bf16.msra.mxu0 %v472
      %493 = vmatprep.subr.bf16.mxu0 0
      %494 = vmatpush1.bf16.msra.mxu0 %v473
      %495 = vmatprep.subr.bf16.mxu0 0
      %496 = vmatpush1.bf16.msra.mxu0 %v474
      %497 = vmatprep.subr.bf16.mxu0 0
      %498 = vmatpush1.bf16.msra.mxu0 %v475
      %499 = vmatprep.subr.bf16.mxu0 0
      %500 = vmatpush1.bf16.msra.mxu0 %v476
      %501 = vmatprep.subr.bf16.mxu0 0
      %502 = vmatpush1.bf16.msra.mxu0 0
      %503 = vmatprep.subr.bf16.mxu0 0
      %504 = vmatpush1.bf16.msra.mxu0 0
      %505 = vmatprep.subr.bf16.mxu0 0
      %506 = vmatpush1.bf16.msra.mxu0 0
      %507 = vmatprep.subr.bf16.mxu0 0
      %508 = vmatpush1.bf16.msra.mxu0 0
      %509 = vmatprep.subr.bf16.mxu0 0
      %510 = vmatpush1.bf16.msra.mxu0 0
      %511 = vmatprep.subr.bf16.mxu0 0
      %512 = vmatpush1.bf16.msra.mxu0 0
      %513 = vmatprep.subr.bf16.mxu0 0
      %514 = vmatpush1.bf16.msra.mxu0 0
      %515 = vmatprep.subr.bf16.mxu0 0
      %516 = vmatpush1.bf16.msra.mxu0 0
      %517 = vmatprep.mubr.bf16.mxu0 0
      %518 = vmatmul.mubr.bf16.gmra.mrb[0].mxu0 %v415
      %v519 = vpop.f32.mrb[0].mxu0
      %v520 = vadd.f32 %v436, %v519
      %v521 = vpop.f32.mrb[0].mxu0
      %v522 = vpop.f32.mrb[0].mxu0
      %v523 = vadd.f32 %v436, %v522
      %v524 = vpop.f32.mrb[0].mxu0
      %525 = vdwg.mxu0
      %v526 = vadd.f32 %v332, %v520
      %v527 = vadd.f32 %v333, %v523
      %v528 = vpack.c.bf16 %v527, %v526
      %v529 = vld [vmem:[%s2 + $0x1] sm:$0x1]
      %v530 = vlaneseq
      %v531 = vshrl.u32 %v530, 7
      %v532 = vsub.s32 0, %v531
      %v533 = vrot.slane %v529, %v532
      %v535 = vsel %vm348, %v528, 0
      %537 = vmatprep.subr.bf16.mxu0 0
      %538 = vmatpush1.bf16.msra.mxu0 %v346
      %539 = vmatprep.subr.bf16.mxu0 0
      %540 = vmatpush1.bf16.msra.mxu0 0
      %541 = vmatprep.subr.bf16.mxu0 0
      %542 = vmatpush1.bf16.msra.mxu0 0
      %543 = vmatprep.subr.bf16.mxu0 0
      %544 = vmatpush1.bf16.msra.mxu0 0
      %545 = vmatprep.subr.bf16.mxu0 0
      %546 = vmatpush1.bf16.msra.mxu0 0
      %547 = vmatprep.subr.bf16.mxu0 0
      %548 = vmatpush1.bf16.msra.mxu0 0
      %549 = vmatprep.subr.bf16.mxu0 0
      %550 = vmatpush1.bf16.msra.mxu0 0
      %551 = vmatprep.subr.bf16.mxu0 0
      %552 = vmatpush1.bf16.msra.mxu0 0
      %553 = vmatprep.subr.bf16.mxu0 0
      %554 = vmatpush1.bf16.msra.mxu0 0
      %555 = vmatprep.subr.bf16.mxu0 0
      %556 = vmatpush1.bf16.msra.mxu0 0
      %557 = vmatprep.subr.bf16.mxu0 0
      %558 = vmatpush1.bf16.msra.mxu0 0
      %559 = vmatprep.subr.bf16.mxu0 0
      %560 = vmatpush1.bf16.msra.mxu0 0
      %561 = vmatprep.subr.bf16.mxu0 0
      %562 = vmatpush1.bf16.msra.mxu0 0
      %563 = vmatprep.subr.bf16.mxu0 0
      %564 = vmatpush1.bf16.msra.mxu0 0
      %565 = vmatprep.subr.bf16.mxu0 0
      %566 = vmatpush1.bf16.msra.mxu0 0
      %567 = vmatprep.subr.bf16.mxu0 0
      %568 = vmatpush1.bf16.msra.mxu0 0
      %569 = vmatprep.mubr.bf16.mxu0 0
      %570 = vmatmul.mubr.bf16.gmra.mrb[0].mxu0 %v535
      %v571 = vpop.f32.mrb[0].mxu0
      %v572 = vadd.f32 %v533, %v571
      %v573 = vpop.f32.mrb[0].mxu0
      %v574 = vpop.f32.mrb[0].mxu0
      %v575 = vadd.f32 %v533, %v574
      %v576 = vpop.f32.mrb[0].mxu0
      %577 = vdwg.mxu0
      %v578 = vadd.f32 %v572, %v393
      %v579 = vadd.f32 %v575, %v394
      %v580 = vmul.f32 %v578, %v578
      %v581 = vmul.f32 %v579, %v579
      %v582 = vmul.f32 %v578, %v580
      %v583 = vmul.f32 %v579, %v581
      %v584 = vmul.f32 %v582, 0.044715
      %v585 = vmul.f32 %v583, 0.044715
      %v586 = vadd.f32 %v578, %v584
      %v587 = vadd.f32 %v579, %v585
      %v588 = vmul.f32 %v586, 0.7978846
      %v589 = vmul.f32 %v587, 0.7978846
      %v590 = vtanh.pop %v588
      %v591 = vtanh.pop %v589
      %v592 = vadd.f32 %v590, 1.0
      %v593 = vadd.f32 %v591, 1.0
      %v594 = vmul.f32 %v592, 0.5
      %v595 = vmul.f32 %v593, 0.5
      %v596 = vmul.f32 %v578, %v594
      %v597 = vmul.f32 %v579, %v595
      %v598 = vpack.c.bf16 %v597, %v596
      %s599 = scalar_lea.vmem %s4, 64
      %v600 = vld [vmem:[%s599] sm:$0xf]
      %v601 = vld [vmem:[%s599 + $0x4] sm:$0xf]
      %v602 = vld [vmem:[%s599 + $0x8] sm:$0xf]
      %v603 = vld [vmem:[%s599 + $0xc] sm:$0xf]
      %v604 = vld [vmem:[%s599 + $0x10] sm:$0xf]
      %v605 = vld [vmem:[%s599 + $0x14] sm:$0xf]
      %v606 = vld [vmem:[%s599 + $0x18] sm:$0xf]
      %v607 = vld [vmem:[%s599 + $0x1c] sm:$0xf]
      %v608 = vld [vmem:[%s599 + $0x20] sm:$0xf]
      %v609 = vld [vmem:[%s599 + $0x24] sm:$0xf]
      %v610 = vld [vmem:[%s599 + $0x28] sm:$0xf]
      %v611 = vld [vmem:[%s599 + $0x2c] sm:$0xf]
      %v612 = vld [vmem:[%s599 + $0x30] sm:$0xf]
      %v613 = vld [vmem:[%s599 + $0x34] sm:$0xf]
      %v614 = vld [vmem:[%s599 + $0x38] sm:$0xf]
      %v615 = vld [vmem:[%s599 + $0x3c] sm:$0xf]
      %v616 = vld [vmem:[%s5 + $0x1] sm:$0x1]
      %v617 = vlaneseq
      %v618 = vshrl.u32 %v617, 7
      %v619 = vsub.s32 0, %v618
      %v620 = vrot.slane %v616, %v619
      %v637 = vunpack.c.l.b16 %v600
      %v638 = vunpack.c.l.b16 %v601
      %v639 = vunpack.c.l.b16 %v602
      %v640 = vunpack.c.l.b16 %v603
      %v641 = vunpack.c.l.b16 %v604
      %v642 = vunpack.c.l.b16 %v605
      %v643 = vunpack.c.l.b16 %v606
      %v644 = vunpack.c.l.b16 %v607
      %v645 = vunpack.c.l.b16 %v608
      %v646 = vunpack.c.l.b16 %v609
      %v647 = vunpack.c.l.b16 %v610
      %v648 = vunpack.c.l.b16 %v611
      %v649 = vunpack.c.l.b16 %v612
      %v650 = vunpack.c.l.b16 %v613
      %v651 = vunpack.c.l.b16 %v614
      %v652 = vunpack.c.l.b16 %v615
      %v653 = vpack.c.b16 %v638, %v637
      %v654 = vpack.c.b16 %v640, %v639
      %v655 = vpack.c.b16 %v642, %v641
      %v656 = vpack.c.b16 %v644, %v643
      %v657 = vpack.c.b16 %v646, %v645
      %v658 = vpack.c.b16 %v648, %v647
      %v659 = vpack.c.b16 %v650, %v649
      %v660 = vpack.c.b16 %v652, %v651
      %669 = vmatprep.subr.bf16.mxu0 0
      %670 = vmatpush1.bf16.msra.mxu0 %v653
      %671 = vmatprep.subr.bf16.mxu0 0
      %672 = vmatpush1.bf16.msra.mxu0 %v654
      %673 = vmatprep.subr.bf16.mxu0 0
      %674 = vmatpush1.bf16.msra.mxu0 %v655
      %675 = vmatprep.subr.bf16.mxu0 0
      %676 = vmatpush1.bf16.msra.mxu0 %v656
      %677 = vmatprep.subr.bf16.mxu0 0
      %678 = vmatpush1.bf16.msra.mxu0 %v657
      %679 = vmatprep.subr.bf16.mxu0 0
      %680 = vmatpush1.bf16.msra.mxu0 %v658
      %681 = vmatprep.subr.bf16.mxu0 0
      %682 = vmatpush1.bf16.msra.mxu0 %v659
      %683 = vmatprep.subr.bf16.mxu0 0
      %684 = vmatpush1.bf16.msra.mxu0 %v660
      %685 = vmatprep.subr.bf16.mxu0 0
      %686 = vmatpush1.bf16.msra.mxu0 0
      %687 = vmatprep.subr.bf16.mxu0 0
      %688 = vmatpush1.bf16.msra.mxu0 0
      %689 = vmatprep.subr.bf16.mxu0 0
      %690 = vmatpush1.bf16.msra.mxu0 0
      %691 = vmatprep.subr.bf16.mxu0 0
      %692 = vmatpush1.bf16.msra.mxu0 0
      %693 = vmatprep.subr.bf16.mxu0 0
      %694 = vmatpush1.bf16.msra.mxu0 0
      %695 = vmatprep.subr.bf16.mxu0 0
      %696 = vmatpush1.bf16.msra.mxu0 0
      %697 = vmatprep.subr.bf16.mxu0 0
      %698 = vmatpush1.bf16.msra.mxu0 0
      %699 = vmatprep.subr.bf16.mxu0 0
      %700 = vmatpush1.bf16.msra.mxu0 0
      %701 = vmatprep.mubr.bf16.mxu0 0
      %702 = vmatmul.mubr.bf16.gmra.mrb[0].mxu0 %v598
      %v703 = vpop.f32.mrb[0].mxu0
      %v704 = vadd.f32 %v620, %v703
      %v705 = vpop.f32.mrb[0].mxu0
      %v706 = vpop.f32.mrb[0].mxu0
      %v707 = vadd.f32 %v620, %v706
      %v708 = vpop.f32.mrb[0].mxu0
      %709 = vdwg.mxu0
      %v710 = vadd.f32 %v526, %v704
      %v711 = vadd.f32 %v527, %v707
      %v712 = vpack.c.bf16 %v711, %v710
      %v713 = vld [vmem:[%s2 + $0x2] sm:$0x1]
      %v714 = vlaneseq
      %v715 = vshrl.u32 %v714, 7
      %v716 = vsub.s32 0, %v715
      %v717 = vrot.slane %v713, %v716
      %v719 = vsel %vm348, %v712, 0
      %721 = vmatprep.subr.bf16.mxu0 0
      %722 = vmatpush1.bf16.msra.mxu0 %v346
      %723 = vmatprep.subr.bf16.mxu0 0
      %724 = vmatpush1.bf16.msra.mxu0 0
      %725 = vmatprep.subr.bf16.mxu0 0
      %726 = vmatpush1.bf16.msra.mxu0 0
      %727 = vmatprep.subr.bf16.mxu0 0
      %728 = vmatpush1.bf16.msra.mxu0 0
      %729 = vmatprep.subr.bf16.mxu0 0
      %730 = vmatpush1.bf16.msra.mxu0 0
      %731 = vmatprep.subr.bf16.mxu0 0
      %732 = vmatpush1.bf16.msra.mxu0 0
      %733 = vmatprep.subr.bf16.mxu0 0
      %734 = vmatpush1.bf16.msra.mxu0 0
      %735 = vmatprep.subr.bf16.mxu0 0
      %736 = vmatpush1.bf16.msra.mxu0 0
      %737 = vmatprep.subr.bf16.mxu0 0
      %738 = vmatpush1.bf16.msra.mxu0 0
      %739 = vmatprep.subr.bf16.mxu0 0
      %740 = vmatpush1.bf16.msra.mxu0 0
      %741 = vmatprep.subr.bf16.mxu0 0
      %742 = vmatpush1.bf16.msra.mxu0 0
      %743 = vmatprep.subr.bf16.mxu0 0
      %744 = vmatpush1.bf16.msra.mxu0 0
      %745 = vmatprep.subr.bf16.mxu0 0
      %746 = vmatpush1.bf16.msra.mxu0 0
      %747 = vmatprep.subr.bf16.mxu0 0
      %748 = vmatpush1.bf16.msra.mxu0 0
      %749 = vmatprep.subr.bf16.mxu0 0
      %750 = vmatpush1.bf16.msra.mxu0 0
      %751 = vmatprep.subr.bf16.mxu0 0
      %752 = vmatpush1.bf16.msra.mxu0 0
      %753 = vmatprep.mubr.bf16.mxu0 0
      %754 = vmatmul.mubr.bf16.gmra.mrb[0].mxu0 %v719
      %v755 = vpop.f32.mrb[0].mxu0
      %v756 = vadd.f32 %v717, %v755
      %v757 = vpop.f32.mrb[0].mxu0
      %v758 = vpop.f32.mrb[0].mxu0
      %v759 = vadd.f32 %v717, %v758
      %v760 = vpop.f32.mrb[0].mxu0
      %761 = vdwg.mxu0
      %v762 = vadd.f32 %v756, %v393
      %v763 = vadd.f32 %v759, %v394
      %v764 = vmul.f32 %v762, %v762
      %v765 = vmul.f32 %v763, %v763
      %v766 = vmul.f32 %v762, %v764
      %v767 = vmul.f32 %v763, %v765
      %v768 = vmul.f32 %v766, 0.044715
      %v769 = vmul.f32 %v767, 0.044715
      %v770 = vadd.f32 %v762, %v768
      %v771 = vadd.f32 %v763, %v769
      %v772 = vmul.f32 %v770, 0.7978846
      %v773 = vmul.f32 %v771, 0.7978846
      %v774 = vtanh.pop %v772
      %v775 = vtanh.pop %v773
      %v776 = vadd.f32 %v774, 1.0
      %v777 = vadd.f32 %v775, 1.0
      %v778 = vmul.f32 %v776, 0.5
      %v779 = vmul.f32 %v777, 0.5
      %v780 = vmul.f32 %v762, %v778
      %v781 = vmul.f32 %v763, %v779
      %v782 = vpack.c.bf16 %v781, %v780
      %s783 = scalar_lea.vmem %s4, 128
      %v784 = vld [vmem:[%s783] sm:$0xf]
      %v785 = vld [vmem:[%s783 + $0x4] sm:$0xf]
      %v786 = vld [vmem:[%s783 + $0x8] sm:$0xf]
      %v787 = vld [vmem:[%s783 + $0xc] sm:$0xf]
      %v788 = vld [vmem:[%s783 + $0x10] sm:$0xf]
      %v789 = vld [vmem:[%s783 + $0x14] sm:$0xf]
      %v790 = vld [vmem:[%s783 + $0x18] sm:$0xf]
      %v791 = vld [vmem:[%s783 + $0x1c] sm:$0xf]
      %v792 = vld [vmem:[%s783 + $0x20] sm:$0xf]
      %v793 = vld [vmem:[%s783 + $0x24] sm:$0xf]
      %v794 = vld [vmem:[%s783 + $0x28] sm:$0xf]
      %v795 = vld [vmem:[%s783 + $0x2c] sm:$0xf]
      %v796 = vld [vmem:[%s783 + $0x30] sm:$0xf]
      %v797 = vld [vmem:[%s783 + $0x34] sm:$0xf]
      %v798 = vld [vmem:[%s783 + $0x38] sm:$0xf]
      %v799 = vld [vmem:[%s783 + $0x3c] sm:$0xf]
      %v800 = vld [vmem:[%s5 + $0x2] sm:$0x1]
      %v801 = vlaneseq
      %v802 = vshrl.u32 %v801, 7
      %v803 = vsub.s32 0, %v802
      %v804 = vrot.slane %v800, %v803
      %v821 = vunpack.c.l.b16 %v784
      %v822 = vunpack.c.l.b16 %v785
      %v823 = vunpack.c.l.b16 %v786
      %v824 = vunpack.c.l.b16 %v787
      %v825 = vunpack.c.l.b16 %v788
      %v826 = vunpack.c.l.b16 %v789
      %v827 = vunpack.c.l.b16 %v790
      %v828 = vunpack.c.l.b16 %v791
      %v829 = vunpack.c.l.b16 %v792
      %v830 = vunpack.c.l.b16 %v793
      %v831 = vunpack.c.l.b16 %v794
      %v832 = vunpack.c.l.b16 %v795
      %v833 = vunpack.c.l.b16 %v796
      %v834 = vunpack.c.l.b16 %v797
      %v835 = vunpack.c.l.b16 %v798
      %v836 = vunpack.c.l.b16 %v799
      %v837 = vpack.c.b16 %v822, %v821
      %v838 = vpack.c.b16 %v824, %v823
      %v839 = vpack.c.b16 %v826, %v825
      %v840 = vpack.c.b16 %v828, %v827
      %v841 = vpack.c.b16 %v830, %v829
      %v842 = vpack.c.b16 %v832, %v831
      %v843 = vpack.c.b16 %v834, %v833
      %v844 = vpack.c.b16 %v836, %v835
      %853 = vmatprep.subr.bf16.mxu0 0
      %854 = vmatpush1.bf16.msra.mxu0 %v837
      %855 = vmatprep.subr.bf16.mxu0 0
      %856 = vmatpush1.bf16.msra.mxu0 %v838
      %857 = vmatprep.subr.bf16.mxu0 0
      %858 = vmatpush1.bf16.msra.mxu0 %v839
      %859 = vmatprep.subr.bf16.mxu0 0
      %860 = vmatpush1.bf16.msra.mxu0 %v840
      %861 = vmatprep.subr.bf16.mxu0 0
      %862 = vmatpush1.bf16.msra.mxu0 %v841
      %863 = vmatprep.subr.bf16.mxu0 0
      %864 = vmatpush1.bf16.msra.mxu0 %v842
      %865 = vmatprep.subr.bf16.mxu0 0
      %866 = vmatpush1.bf16.msra.mxu0 %v843
      %867 = vmatprep.subr.bf16.mxu0 0
      %868 = vmatpush1.bf16.msra.mxu0 %v844
      %869 = vmatprep.subr.bf16.mxu0 0
      %870 = vmatpush1.bf16.msra.mxu0 0
      %871 = vmatprep.subr.bf16.mxu0 0
      %872 = vmatpush1.bf16.msra.mxu0 0
      %873 = vmatprep.subr.bf16.mxu0 0
      %874 = vmatpush1.bf16.msra.mxu0 0
      %875 = vmatprep.subr.bf16.mxu0 0
      %876 = vmatpush1.bf16.msra.mxu0 0
      %877 = vmatprep.subr.bf16.mxu0 0
      %878 = vmatpush1.bf16.msra.mxu0 0
      %879 = vmatprep.subr.bf16.mxu0 0
      %880 = vmatpush1.bf16.msra.mxu0 0
      %881 = vmatprep.subr.bf16.mxu0 0
      %882 = vmatpush1.bf16.msra.mxu0 0
      %883 = vmatprep.subr.bf16.mxu0 0
      %884 = vmatpush1.bf16.msra.mxu0 0
      %885 = vmatprep.mubr.bf16.mxu0 0
      %886 = vmatmul.mubr.bf16.gmra.mrb[0].mxu0 %v782
      %v887 = vpop.f32.mrb[0].mxu0
      %v888 = vadd.f32 %v804, %v887
      %v889 = vpop.f32.mrb[0].mxu0
      %v890 = vpop.f32.mrb[0].mxu0
      %v891 = vadd.f32 %v804, %v890
      %v892 = vpop.f32.mrb[0].mxu0
      %893 = vdwg.mxu0
      %v894 = vadd.f32 %v710, %v888
      %v895 = vadd.f32 %v711, %v891
      %v896 = vpack.c.bf16 %v895, %v894
      %v897 = vld [vmem:[%s2 + $0x3] sm:$0x1]
      %v898 = vlaneseq
      %v899 = vshrl.u32 %v898, 7
      %v900 = vsub.s32 0, %v899
      %v901 = vrot.slane %v897, %v900
      %v903 = vsel %vm348, %v896, 0
      %905 = vmatprep.subr.bf16.mxu0 0
      %906 = vmatpush1.bf16.msra.mxu0 %v346
      %907 = vmatprep.subr.bf16.mxu0 0
      %908 = vmatpush1.bf16.msra.mxu0 0
      %909 = vmatprep.subr.bf16.mxu0 0
      %910 = vmatpush1.bf16.msra.mxu0 0
      %911 = vmatprep.subr.bf16.mxu0 0
      %912 = vmatpush1.bf16.msra.mxu0 0
      %913 = vmatprep.subr.bf16.mxu0 0
      %914 = vmatpush1.bf16.msra.mxu0 0
      %915 = vmatprep.subr.bf16.mxu0 0
      %916 = vmatpush1.bf16.msra.mxu0 0
      %917 = vmatprep.subr.bf16.mxu0 0
      %918 = vmatpush1.bf16.msra.mxu0 0
      %919 = vmatprep.subr.bf16.mxu0 0
      %920 = vmatpush1.bf16.msra.mxu0 0
      %921 = vmatprep.subr.bf16.mxu0 0
      %922 = vmatpush1.bf16.msra.mxu0 0
      %923 = vmatprep.subr.bf16.mxu0 0
      %924 = vmatpush1.bf16.msra.mxu0 0
      %925 = vmatprep.subr.bf16.mxu0 0
      %926 = vmatpush1.bf16.msra.mxu0 0
      %927 = vmatprep.subr.bf16.mxu0 0
      %928 = vmatpush1.bf16.msra.mxu0 0
      %929 = vmatprep.subr.bf16.mxu0 0
      %930 = vmatpush1.bf16.msra.mxu0 0
      %931 = vmatprep.subr.bf16.mxu0 0
      %932 = vmatpush1.bf16.msra.mxu0 0
      %933 = vmatprep.subr.bf16.mxu0 0
      %934 = vmatpush1.bf16.msra.mxu0 0
      %935 = vmatprep.subr.bf16.mxu0 0
      %936 = vmatpush1.bf16.msra.mxu0 0
      %937 = vmatprep.mubr.bf16.mxu0 0
      %938 = vmatmul.mubr.bf16.gmra.mrb[0].mxu0 %v903
      %v939 = vpop.f32.mrb[0].mxu0
      %v940 = vadd.f32 %v901, %v939
      %v941 = vpop.f32.mrb[0].mxu0
      %v942 = vpop.f32.mrb[0].mxu0
      %v943 = vadd.f32 %v901, %v942
      %v944 = vpop.f32.mrb[0].mxu0
      %945 = vdwg.mxu0
      %v946 = vadd.f32 %v940, %v393
      %v947 = vadd.f32 %v943, %v394
      %v948 = vmul.f32 %v946, %v946
      %v949 = vmul.f32 %v947, %v947
      %v950 = vmul.f32 %v946, %v948
      %v951 = vmul.f32 %v947, %v949
      %v952 = vmul.f32 %v950, 0.044715
      %v953 = vmul.f32 %v951, 0.044715
      %v954 = vadd.f32 %v946, %v952
      %v955 = vadd.f32 %v947, %v953
      %v956 = vmul.f32 %v954, 0.7978846
      %v957 = vmul.f32 %v955, 0.7978846
      %v958 = vtanh.pop %v956
      %v959 = vtanh.pop %v957
      %v960 = vadd.f32 %v958, 1.0
      %v961 = vadd.f32 %v959, 1.0
      %v962 = vmul.f32 %v960, 0.5
      %v963 = vmul.f32 %v961, 0.5
      %v964 = vmul.f32 %v946, %v962
      %v965 = vmul.f32 %v947, %v963
      %v966 = vpack.c.bf16 %v965, %v964
      %s967 = scalar_lea.vmem %s4, 192
      %v968 = vld [vmem:[%s967] sm:$0xf]
      %v969 = vld [vmem:[%s967 + $0x4] sm:$0xf]
      %v970 = vld [vmem:[%s967 + $0x8] sm:$0xf]
      %v971 = vld [vmem:[%s967 + $0xc] sm:$0xf]
      %v972 = vld [vmem:[%s967 + $0x10] sm:$0xf]
      %v973 = vld [vmem:[%s967 + $0x14] sm:$0xf]
      %v974 = vld [vmem:[%s967 + $0x18] sm:$0xf]
      %v975 = vld [vmem:[%s967 + $0x1c] sm:$0xf]
      %v976 = vld [vmem:[%s967 + $0x20] sm:$0xf]
      %v977 = vld [vmem:[%s967 + $0x24] sm:$0xf]
      %v978 = vld [vmem:[%s967 + $0x28] sm:$0xf]
      %v979 = vld [vmem:[%s967 + $0x2c] sm:$0xf]
      %v980 = vld [vmem:[%s967 + $0x30] sm:$0xf]
      %v981 = vld [vmem:[%s967 + $0x34] sm:$0xf]
      %v982 = vld [vmem:[%s967 + $0x38] sm:$0xf]
      %v983 = vld [vmem:[%s967 + $0x3c] sm:$0xf]
      %v984 = vld [vmem:[%s5 + $0x3] sm:$0x1]
      %v985 = vlaneseq
      %v986 = vshrl.u32 %v985, 7
      %v987 = vsub.s32 0, %v986
      %v988 = vrot.slane %v984, %v987
      %v1005 = vunpack.c.l.b16 %v968
      %v1006 = vunpack.c.l.b16 %v969
      %v1007 = vunpack.c.l.b16 %v970
      %v1008 = vunpack.c.l.b16 %v971
      %v1009 = vunpack.c.l.b16 %v972
      %v1010 = vunpack.c.l.b16 %v973
      %v1011 = vunpack.c.l.b16 %v974
      %v1012 = vunpack.c.l.b16 %v975
      %v1013 = vunpack.c.l.b16 %v976
      %v1014 = vunpack.c.l.b16 %v977
      %v1015 = vunpack.c.l.b16 %v978
      %v1016 = vunpack.c.l.b16 %v979
      %v1017 = vunpack.c.l.b16 %v980
      %v1018 = vunpack.c.l.b16 %v981
      %v1019 = vunpack.c.l.b16 %v982
      %v1020 = vunpack.c.l.b16 %v983
      %v1021 = vpack.c.b16 %v1006, %v1005
      %v1022 = vpack.c.b16 %v1008, %v1007
      %v1023 = vpack.c.b16 %v1010, %v1009
      %v1024 = vpack.c.b16 %v1012, %v1011
      %v1025 = vpack.c.b16 %v1014, %v1013
      %v1026 = vpack.c.b16 %v1016, %v1015
      %v1027 = vpack.c.b16 %v1018, %v1017
      %v1028 = vpack.c.b16 %v1020, %v1019
      %1037 = vmatprep.subr.bf16.mxu0 0
      %1038 = vmatpush1.bf16.msra.mxu0 %v1021
      %1039 = vmatprep.subr.bf16.mxu0 0
      %1040 = vmatpush1.bf16.msra.mxu0 %v1022
      %1041 = vmatprep.subr.bf16.mxu0 0
      %1042 = vmatpush1.bf16.msra.mxu0 %v1023
      %1043 = vmatprep.subr.bf16.mxu0 0
      %1044 = vmatpush1.bf16.msra.mxu0 %v1024
      %1045 = vmatprep.subr.bf16.mxu0 0
      %1046 = vmatpush1.bf16.msra.mxu0 %v1025
      %1047 = vmatprep.subr.bf16.mxu0 0
      %1048 = vmatpush1.bf16.msra.mxu0 %v1026
      %1049 = vmatprep.subr.bf16.mxu0 0
      %1050 = vmatpush1.bf16.msra.mxu0 %v1027
      %1051 = vmatprep.subr.bf16.mxu0 0
      %1052 = vmatpush1.bf16.msra.mxu0 %v1028
      %1053 = vmatprep.subr.bf16.mxu0 0
      %1054 = vmatpush1.bf16.msra.mxu0 0
      %1055 = vmatprep.subr.bf16.mxu0 0
      %1056 = vmatpush1.bf16.msra.mxu0 0
      %1057 = vmatprep.subr.bf16.mxu0 0
      %1058 = vmatpush1.bf16.msra.mxu0 0
      %1059 = vmatprep.subr.bf16.mxu0 0
      %1060 = vmatpush1.bf16.msra.mxu0 0
      %1061 = vmatprep.subr.bf16.mxu0 0
      %1062 = vmatpush1.bf16.msra.mxu0 0
      %1063 = vmatprep.subr.bf16.mxu0 0
      %1064 = vmatpush1.bf16.msra.mxu0 0
      %1065 = vmatprep.subr.bf16.mxu0 0
      %1066 = vmatpush1.bf16.msra.mxu0 0
      %1067 = vmatprep.subr.bf16.mxu0 0
      %1068 = vmatpush1.bf16.msra.mxu0 0
      %1069 = vmatprep.mubr.bf16.mxu0 0
      %1070 = vmatmul.mubr.bf16.gmra.mrb[0].mxu0 %v966
      %v1071 = vpop.f32.mrb[0].mxu0
      %v1072 = vadd.f32 %v988, %v1071
      %v1073 = vpop.f32.mrb[0].mxu0
      %v1074 = vpop.f32.mrb[0].mxu0
      %v1075 = vadd.f32 %v988, %v1074
      %v1076 = vpop.f32.mrb[0].mxu0
      %1077 = vdwg.mxu0
      %v1078 = vadd.f32 %v894, %v1072
      %v1079 = vadd.f32 %v895, %v1075
      %v1080 = vpack.c.bf16 %v1079, %v1078
      %v1081 = vld [vmem:[%s6] sm:$0xf]
      %v1082 = vld [vmem:[%s6 + $0x4] sm:$0xf]
      %v1083 = vld [vmem:[%s7] sm:$0x1]
      %v1085 = vlaneseq
      %v1086 = vshrl.u32 %v1085, 7
      %v1087 = vsub.s32 0, %v1086
      %v1088 = vrot.slane %v1083, %v1087
      %v1092 = vunpack.c.l.b16 %v1081
      %v1093 = vunpack.c.l.b16 %v1082
      %v1094 = vpack.c.b16 %v1093, %v1092
      %v1097 = vsel %vm348, %v1080, 0
      %1099 = vmatprep.subr.bf16.mxu0 0
      %1100 = vmatpush1.bf16.msra.mxu0 %v1094
      %1101 = vmatprep.subr.bf16.mxu0 0
      %1102 = vmatpush1.bf16.msra.mxu0 0
      %1103 = vmatprep.subr.bf16.mxu0 0
      %1104 = vmatpush1.bf16.msra.mxu0 0
      %1105 = vmatprep.subr.bf16.mxu0 0
      %1106 = vmatpush1.bf16.msra.mxu0 0
      %1107 = vmatprep.subr.bf16.mxu0 0
      %1108 = vmatpush1.bf16.msra.mxu0 0
      %1109 = vmatprep.subr.bf16.mxu0 0
      %1110 = vmatpush1.bf16.msra.mxu0 0
      %1111 = vmatprep.subr.bf16.mxu0 0
      %1112 = vmatpush1.bf16.msra.mxu0 0
      %1113 = vmatprep.subr.bf16.mxu0 0
      %1114 = vmatpush1.bf16.msra.mxu0 0
      %1115 = vmatprep.subr.bf16.mxu0 0
      %1116 = vmatpush1.bf16.msra.mxu0 0
      %1117 = vmatprep.subr.bf16.mxu0 0
      %1118 = vmatpush1.bf16.msra.mxu0 0
      %1119 = vmatprep.subr.bf16.mxu0 0
      %1120 = vmatpush1.bf16.msra.mxu0 0
      %1121 = vmatprep.subr.bf16.mxu0 0
      %1122 = vmatpush1.bf16.msra.mxu0 0
      %1123 = vmatprep.subr.bf16.mxu0 0
      %1124 = vmatpush1.bf16.msra.mxu0 0
      %1125 = vmatprep.subr.bf16.mxu0 0
      %1126 = vmatpush1.bf16.msra.mxu0 0
      %1127 = vmatprep.subr.bf16.mxu0 0
      %1128 = vmatpush1.bf16.msra.mxu0 0
      %1129 = vmatprep.subr.bf16.mxu0 0
      %1130 = vmatpush1.bf16.msra.mxu0 0
      %1131 = vmatprep.mubr.bf16.mxu0 0
      %1132 = vmatmul.mubr.bf16.gmra.mrb[0].mxu0 %v1097
      %v1133 = vpop.f32.mrb[0].mxu0
      %v1134 = vadd.f32 %v1088, %v1133
      %v1135 = vpop.f32.mrb[0].mxu0
      %v1136 = vpop.f32.mrb[0].mxu0
      %v1137 = vadd.f32 %v1088, %v1136
      %v1138 = vpop.f32.mrb[0].mxu0
      %1139 = vdwg.mxu0
      %v1140 = vtanh.pop %v1134
      %v1141 = vtanh.pop %v1137
      %vm1142 = vcmask 261120
      %1143 = vst.msk [vmem:[%s329] sm:$0xff] %vm1142, %v1140
      %1144 = vst.msk [vmem:[%s329 + $0x8] sm:$0xff] %vm1142, %v1141
      %s1145 = smul.u32 2, %s19
      %p1146 = scmp.lt.s32.totalorder %s1145, 3
      %s1147 = scalar_select %p1146, %s1145, 3
      %s1148 = smul.addr %s1147, 8
      %s1149 = scalar_lea.vmem %s8, %s1148
      // Predicated region
      $region53: #{_forward_impl.1} parent=51 // pred_check
        %p1150 = pneg %p215
      $region54: #{_forward_impl.1} parent=51 // pred_check_branch
        %1152 = sbr.rel (%p1150) target = $region56
      $region55: #{_forward_impl.1} parent=51 // pred_region
        %s1153 = smul.u32 2, %s19
      $region56: #{_forward_impl.1} parent=51 // pred_fallthru
        _
    $region52: #{_forward_impl.1} parent=5 // pred_fallthru
      _
    %p1154 = scmp.le.s32.totalorder 2, %s14
    // Predicated region
    $region57: #{_forward_impl.1} parent=5 // pred_check
      %p1155 = pneg %p1154
    $region58: #{_forward_impl.1} parent=5 // pred_check_branch
      %1157 = sbr.rel (%p1155) target = $region60
    $region59: #{_forward_impl.1} parent=5 // pred_region
      %s1158 = ssub.s32 %s14, 2
      // Predicated region
      $region61: #{_forward_impl.1} parent=59 // pred_check
        %p1159 = pneg %p221
      $region62: #{_forward_impl.1} parent=59 // pred_check_branch
        %1161 = sbr.rel (%p1159) target = $region64
      $region63: #{_forward_impl.1} parent=59 // pred_region
        %s1162 = smul.u32 2, %s20
        %p1163 = scmp.lt.s32.totalorder %s1162, 3
        %s1164 = scalar_select %p1163, %s1162, 3
        %s1165 = smul.addr %s1164, 8
        %s1166 = scalar_lea.vmem %s8, %s1165
      $region64: #{_forward_impl.1} parent=59 // pred_fallthru
        _
    $region60: #{_forward_impl.1} parent=5 // pred_fallthru
      _
  $region6: #{_forward_impl.1} parent=0 // loop_footer
    %s18 = sadd.s32 1, %s14
  $region7: #{_forward_impl.1} parent=0 // loop_footer_branch
    %13 = sbr.rel target = $region3
  $region8: #{_forward_impl.1} parent=0 // loop_exit
    _

</llo_original>
